<compile_context>
chip_gen: v7x
topology: tpu7x:2x2x1
jax: 0.10.0
libtpu: 0.0.40
codegen_flags: <defaults>
</compile_context>

<pallas_src>
import math

import jax
import jax.numpy as jnp
from jax import lax
from jax.experimental import pallas as pl
from jax.experimental.pallas import tpu as pltpu


# ----------------------------------------------------------------------------
# In-kernel helpers
# ----------------------------------------------------------------------------
def _conv3x3_gemm(xpad, w2d, b2d, H, W, Cin, compute_dtype):
    """3x3 'same' conv as a single MXU GEMM.

    xpad: (H+2, W+2, Cin) f32 zero-padded activation (value).
    w2d : (9*Cin, Cout) weights in `compute_dtype`, tap-major layout matching
          HWIO.reshape(9*Cin, Cout).
    b2d : (1, Cout) f32 bias.
    Returns (H*W, Cout) f32.
    """
    taps = []
    for kh in range(3):
        for kw in range(3):
            taps.append(xpad[kh:kh + H, kw:kw + W, :].reshape(H * W, Cin))
    patches = jnp.concatenate(taps, axis=-1).astype(compute_dtype)  # (H*W, 9*Cin)
    acc = jnp.dot(patches, w2d, preferred_element_type=jnp.float32)
    return acc + b2d


def _leaky_relu(x, alpha):
    return jnp.where(x >= 0, x, alpha * x)


# ----------------------------------------------------------------------------
# Single 3x3 conv kernel (head / upsampler / tail convs)
# ----------------------------------------------------------------------------
def _make_conv_kernel(H, W, Cin, Cout, alpha, compute_dtype):
    def kernel(x_ref, w_ref, b_ref, o_ref, xpad):
        # Zero halo + interior write: padding never touches HBM.
        xpad[...] = jnp.zeros((H + 2, W + 2, Cin), jnp.float32)
        xpad[1:H + 1, 1:W + 1, :] = x_ref[0]
        acc = _conv3x3_gemm(xpad[...], w_ref[...], b_ref[...],
                            H, W, Cin, compute_dtype)
        if alpha is not None:
            acc = _leaky_relu(acc, alpha)
        o_ref[0] = acc.reshape(H, W, Cout)
    return kernel


def conv3x3(x, w2d, b, *, alpha=None, compute_dtype=jnp.float32):
    """3x3 'same' conv with bias (NHWC). One Pallas grid step per image."""
    B, H, W, Cin = x.shape
    Cout = w2d.shape[-1]
    kernel = _make_conv_kernel(H, W, Cin, Cout, alpha, compute_dtype)
    return pl.pallas_call(
        kernel,
        out_shape=jax.ShapeDtypeStruct((B, H, W, Cout), jnp.float32),
        grid_spec=pltpu.PrefetchScalarGridSpec(
            num_scalar_prefetch=0,
            grid=(B,),
            in_specs=[
                pl.BlockSpec((1, H, W, Cin), lambda i: (i, 0, 0, 0)),
                pl.BlockSpec((9 * Cin, Cout), lambda i: (0, 0)),
                pl.BlockSpec((1, Cout), lambda i: (0, 0)),
            ],
            out_specs=pl.BlockSpec((1, H, W, Cout), lambda i: (i, 0, 0, 0)),
            scratch_shapes=[pltpu.VMEM((H + 2, W + 2, Cin), jnp.float32)],
        ),
        compiler_params=pltpu.CompilerParams(
            dimension_semantics=("parallel",)),
    )(x, w2d.astype(compute_dtype), b.reshape(1, Cout).astype(jnp.float32))


# ----------------------------------------------------------------------------
# Fused body kernel: all resblocks + trailing conv + long skip in one call
# ----------------------------------------------------------------------------
def _make_body_kernel(H, W, C, n_resblocks, res_scale, compute_dtype):
    def kernel(x_ref, wres_ref, bres_ref, wt_ref, bt_ref, o_ref, buf, tmp):
        zeros = jnp.zeros((H + 2, W + 2, C), jnp.float32)
        buf[...] = zeros
        tmp[...] = zeros
        buf[1:H + 1, 1:W + 1, :] = x_ref[0]       # head output, padded in VMEM

        for rb in range(n_resblocks):
            yp = buf[...]                          # padded running activation
            h = _conv3x3_gemm(yp, wres_ref[2 * rb],
                              bres_ref[2 * rb:2 * rb + 1, :],
                              H, W, C, compute_dtype)
            h = _leaky_relu(h, 0.2)
            tmp[1:H + 1, 1:W + 1, :] = h.reshape(H, W, C)
            z = _conv3x3_gemm(tmp[...], wres_ref[2 * rb + 1],
                              bres_ref[2 * rb + 1:2 * rb + 2, :],
                              H, W, C, compute_dtype)
            z = z.reshape(H, W, C)
            if res_scale != 1.0:
                z = z * res_scale
            buf[1:H + 1, 1:W + 1, :] = z + yp[1:H + 1, 1:W + 1, :]

        z = _conv3x3_gemm(buf[...], wt_ref[...], bt_ref[...],
                          H, W, C, compute_dtype)
        o_ref[0] = z.reshape(H, W, C) + x_ref[0]   # long skip: res += head(x)
    return kernel


def body_fused(x, w_res, b_res, w_tail, b_tail, *, n_resblocks, res_scale,
               compute_dtype=jnp.float32):
    B, H, W, C = x.shape
    assert n_resblocks >= 1
    kernel = _make_body_kernel(H, W, C, n_resblocks, float(res_scale),
                               compute_dtype)
    return pl.pallas_call(
        kernel,
        out_shape=jax.ShapeDtypeStruct((B, H, W, C), jnp.float32),
        grid_spec=pltpu.PrefetchScalarGridSpec(
            num_scalar_prefetch=0,
            grid=(B,),
            in_specs=[
                pl.BlockSpec((1, H, W, C), lambda i: (i, 0, 0, 0)),
                pl.BlockSpec((2 * n_resblocks, 9 * C, C), lambda i: (0, 0, 0)),
                pl.BlockSpec((2 * n_resblocks, C), lambda i: (0, 0)),
                pl.BlockSpec((9 * C, C), lambda i: (0, 0)),
                pl.BlockSpec((1, C), lambda i: (0, 0)),
            ],
            out_specs=pl.BlockSpec((1, H, W, C), lambda i: (i, 0, 0, 0)),
            scratch_shapes=[
                pltpu.VMEM((H + 2, W + 2, C), jnp.float32),
                pltpu.VMEM((H + 2, W + 2, C), jnp.float32),
            ],
        ),
        compiler_params=pltpu.CompilerParams(
            dimension_semantics=("parallel",)),
    )(x, w_res.astype(compute_dtype), b_res.astype(jnp.float32),
      w_tail.astype(compute_dtype), b_tail.reshape(1, C).astype(jnp.float32))


# ----------------------------------------------------------------------------
# Layout glue (exact NHWC analogue of the PyTorch NCHW view/permute semantics)
# ----------------------------------------------------------------------------
def downshuffle_nhwc(x, r):
    # PyTorch: out channel c*r*r + r1*r + r2 samples pixel (oh*r+r1, ow*r+r2)
    b, h, w, c = x.shape
    oh, ow = h // r, w // r
    x = x.reshape(b, oh, r, ow, r, c)
    x = x.transpose(0, 1, 3, 5, 2, 4)          # (b, oh, ow, c, r1, r2)
    return x.reshape(b, oh, ow, c * r * r)


def pixel_shuffle_nhwc(x, r):
    # PyTorch PixelShuffle: in channel c*r*r + r1*r + r2 -> (c, h*r+r1, w*r+r2)
    b, h, w, crr = x.shape
    c = crr // (r * r)
    x = x.reshape(b, h, w, c, r, r)
    x = x.transpose(0, 1, 4, 2, 5, 3)          # (b, h, r1, w, r2, c)
    return x.reshape(b, h * r, w * r, c)


# ----------------------------------------------------------------------------
# Parameters (deterministic synthetic init) and forward passes
# ----------------------------------------------------------------------------
def init_params(key, n_colors, n_feats, n_resblocks, scale, o_colors):
    def conv_p(k, cin, cout):
        kw, kb = jax.random.split(k)
        w = jax.random.normal(kw, (3, 3, cin, cout), jnp.float32) / jnp.sqrt(9.0 * cin)
        b = jax.random.normal(kb, (cout,), jnp.float32) * 0.01
        return w, b

    n_up = int(math.log2(scale))
    keys = iter(jax.random.split(key, 1 + 2 * n_resblocks + 1 + n_up + 1))
    params = {}
    params["head"] = conv_p(next(keys), n_colors, n_feats)
    params["body_blocks"] = [
        (conv_p(next(keys), n_feats, n_feats), conv_p(next(keys), n_feats, n_feats))
        for _ in range(n_resblocks)
    ]
    params["body_tail"] = conv_p(next(keys), n_feats, n_feats)
    params["upsample"] = [conv_p(next(keys), n_feats, 4 * n_feats) for _ in range(n_up)]
    params["tail"] = conv_p(next(keys), n_feats, o_colors)
    return params


def _flatten_w(w):
    # HWIO (3,3,Cin,Cout) -> (9*Cin, Cout); tap-major order matches im2col.
    return w.reshape(-1, w.shape[-1])


def net_forward(params, x_nchw, *, res_scale=1.0, compute_dtype=jnp.float32):
    cd = compute_dtype
    x = jnp.transpose(x_nchw, (0, 2, 3, 1))            # NCHW -> NHWC
    x = downshuffle_nhwc(x, 2)

    wh, bh = params["head"]
    feat = conv3x3(x, _flatten_w(wh), bh, compute_dtype=cd)

    blocks = params["body_blocks"]
    w_res = jnp.stack([_flatten_w(w)
                       for (w1, b1), (w2, b2) in blocks for w in (w1, w2)])
    b_res = jnp.stack([b
                       for (w1, b1), (w2, b2) in blocks for b in (b1, b2)])
    wt, bt = params["body_tail"]
    y = body_fused(feat, w_res, b_res, _flatten_w(wt), bt,
                   n_resblocks=len(blocks), res_scale=res_scale,
                   compute_dtype=cd)

    for wu, bu in params["upsample"]:
        y = conv3x3(y, _flatten_w(wu), bu, compute_dtype=cd)
        # PixelShuffle(2): pure layout permute, kept as XLA glue between calls.
        y = pixel_shuffle_nhwc(y, 2)

    w_out, b_out = params["tail"]
    y = conv3x3(y, _flatten_w(w_out), b_out, compute_dtype=cd)
    return jnp.transpose(y, (0, 3, 1, 2))              # NHWC -> NCHW


def net_forward_ref(params, x_nchw, *, res_scale=1.0):
    # Pure-JAX f32 reference for validation.
    def conv_ref(x, w, b):
        y = lax.conv_general_dilated(x, w, (1, 1), "SAME",
                                     dimension_numbers=("NHWC", "HWIO", "NHWC"))
        return y + b

    x = jnp.transpose(x_nchw, (0, 2, 3, 1))
    x = downshuffle_nhwc(x, 2)
    feat = conv_ref(x, *params["head"])
    y = feat
    for (w1, b1), (w2, b2) in params["body_blocks"]:
        h = conv_ref(y, w1, b1)
        h = jnp.where(h >= 0, h, 0.2 * h)
        y = conv_ref(h, w2, b2) * res_scale + y
    y = conv_ref(y, *params["body_tail"]) + feat
    for wu, bu in params["upsample"]:
        y = pixel_shuffle_nhwc(conv_ref(y, wu, bu), 2)
    y = conv_ref(y, *params["tail"])
    return jnp.transpose(y, (0, 3, 1, 2))


if __name__ == "__main__":
    # Small config: args.n_colors = 4 * raw_channels (head sees the downshuffle)
    B, C_in, H, W = 2, 3, 16, 16
    n_feats, n_resblocks, scale, o_colors, res_scale = 16, 2, 2, 3, 1.0

    key = jax.random.PRNGKey(0)
    pkey, xkey = jax.random.split(key)
    params = init_params(pkey, 4 * C_in, n_feats, n_resblocks, scale, o_colors)
    x = jax.random.normal(xkey, (B, C_in, H, W), jnp.float32)

    # f32 path: strict check against the lax.conv reference.
    out = jax.block_until_ready(net_forward(params, x, res_scale=res_scale))
    ref = net_forward_ref(params, x, res_scale=res_scale)
    assert out.shape == (B, o_colors, H, W), out.shape
    assert jnp.allclose(out, ref, atol=1e-3, rtol=1e-3), \
        float(jnp.max(jnp.abs(out - ref)))

    # bf16-matmul / f32-accumulate path (MXU-friendly on v6e/v7x): loose check.
    out_bf16 = jax.block_until_ready(
        net_forward(params, x, res_scale=res_scale, compute_dtype=jnp.bfloat16))
    rel = (jnp.linalg.norm((out_bf16 - ref).ravel())
           / (jnp.linalg.norm(ref.ravel()) + 1e-12))
    assert out_bf16.shape == (B, o_colors, H, W), out_bf16.shape
    assert bool(rel < 0.1), float(rel)

    print("KERNEL_OK")
</pallas_src>

<mosaic_0001>
module attributes {stable_mosaic.version = 11 : i64} {
  func.func @kernel(%arg0: i32, %arg1: memref<1x8x8x12xf32, #tpu.memory_space<vmem>>, %arg2: memref<108x16xf32, #tpu.memory_space<vmem>>, %arg3: memref<1x16xf32, #tpu.memory_space<vmem>>, %arg4: memref<1x8x8x16xf32, #tpu.memory_space<vmem>>, %arg5: memref<10x10x12xf32, #tpu.memory_space<vmem>>) attributes {dimension_semantics = [#tpu.dimension_semantics<parallel>], iteration_bounds = array<i64: 2>, scalar_prefetch = 0 : i64, scratch_operands = 1 : i64, tpu.core_type = #tpu.core_type<tc>, window_params = [{transform_indices = @transform_0, window_bounds = array<i64: 1, 8, 8, 12>}, {pipeline_mode = #tpu.pipeline_mode<synchronous>, transform_indices = @transform_1, window_bounds = array<i64: 108, 16>}, {pipeline_mode = #tpu.pipeline_mode<synchronous>, transform_indices = @transform_2, window_bounds = array<i64: 1, 16>}, {transform_indices = @transform_3, window_bounds = array<i64: 1, 8, 8, 16>}]} {
    %cst = arith.constant 0.000000e+00 : f32
    %0 = vector.broadcast %cst : f32 to vector<10x10x12xf32>
    %c0 = arith.constant 0 : index
    %c0_0 = arith.constant 0 : index
    %c0_1 = arith.constant 0 : index
    %1 = vector.load %arg5[%c0, %c0_0, %c0_1] : memref<10x10x12xf32, #tpu.memory_space<vmem>>, vector<10x10x12xf32>
    tpu.vector_store %arg5[%c0, %c0_0, %c0_1], %0 {strides = array<i32>} : memref<10x10x12xf32, #tpu.memory_space<vmem>>, vector<10x10x12xf32>,
    %c0_2 = arith.constant 0 : index
    %c0_3 = arith.constant 0 : index
    %c0_4 = arith.constant 0 : index
    %c0_5 = arith.constant 0 : index
    %2 = vector.load %arg1[%c0_2, %c0_3, %c0_4, %c0_5] : memref<1x8x8x12xf32, #tpu.memory_space<vmem>>, vector<1x8x8x12xf32>
    %3 = vector.shape_cast %2 : vector<1x8x8x12xf32> to vector<8x8x12xf32>
    %c1 = arith.constant 1 : index
    %c1_6 = arith.constant 1 : index
    %c0_7 = arith.constant 0 : index
    %4 = vector.load %arg5[%c1, %c1_6, %c0_7] : memref<10x10x12xf32, #tpu.memory_space<vmem>>, vector<8x8x12xf32>
    tpu.vector_store %arg5[%c1, %c1_6, %c0_7], %3 {strides = array<i32>} : memref<10x10x12xf32, #tpu.memory_space<vmem>>, vector<8x8x12xf32>,
    %c0_8 = arith.constant 0 : index
    %c0_9 = arith.constant 0 : index
    %c0_10 = arith.constant 0 : index
    %5 = vector.load %arg5[%c0_8, %c0_9, %c0_10] : memref<10x10x12xf32, #tpu.memory_space<vmem>>, vector<10x10x12xf32>
    %c0_11 = arith.constant 0 : index
    %c0_12 = arith.constant 0 : index
    %6 = vector.load %arg2[%c0_11, %c0_12] : memref<108x16xf32, #tpu.memory_space<vmem>>, vector<108x16xf32>
    %c0_13 = arith.constant 0 : index
    %c0_14 = arith.constant 0 : index
    %7 = vector.load %arg3[%c0_13, %c0_14] : memref<1x16xf32, #tpu.memory_space<vmem>>, vector<1x16xf32>
    %8 = vector.extract_strided_slice %5 {offsets = [0, 0, 0], sizes = [8, 8, 12], strides = [1, 1, 1]} : vector<10x10x12xf32> to vector<8x8x12xf32>
    %9 = vector.shape_cast %8 : vector<8x8x12xf32> to vector<64x12xf32>
    %10 = vector.extract_strided_slice %5 {offsets = [0, 1, 0], sizes = [8, 8, 12], strides = [1, 1, 1]} : vector<10x10x12xf32> to vector<8x8x12xf32>
    %11 = vector.shape_cast %10 : vector<8x8x12xf32> to vector<64x12xf32>
    %12 = vector.extract_strided_slice %5 {offsets = [0, 2, 0], sizes = [8, 8, 12], strides = [1, 1, 1]} : vector<10x10x12xf32> to vector<8x8x12xf32>
    %13 = vector.shape_cast %12 : vector<8x8x12xf32> to vector<64x12xf32>
    %14 = vector.extract_strided_slice %5 {offsets = [1, 0, 0], sizes = [8, 8, 12], strides = [1, 1, 1]} : vector<10x10x12xf32> to vector<8x8x12xf32>
    %15 = vector.shape_cast %14 : vector<8x8x12xf32> to vector<64x12xf32>
    %16 = vector.extract_strided_slice %5 {offsets = [1, 1, 0], sizes = [8, 8, 12], strides = [1, 1, 1]} : vector<10x10x12xf32> to vector<8x8x12xf32>
    %17 = vector.shape_cast %16 : vector<8x8x12xf32> to vector<64x12xf32>
    %18 = vector.extract_strided_slice %5 {offsets = [1, 2, 0], sizes = [8, 8, 12], strides = [1, 1, 1]} : vector<10x10x12xf32> to vector<8x8x12xf32>
    %19 = vector.shape_cast %18 : vector<8x8x12xf32> to vector<64x12xf32>
    %20 = vector.extract_strided_slice %5 {offsets = [2, 0, 0], sizes = [8, 8, 12], strides = [1, 1, 1]} : vector<10x10x12xf32> to vector<8x8x12xf32>
    %21 = vector.shape_cast %20 : vector<8x8x12xf32> to vector<64x12xf32>
    %22 = vector.extract_strided_slice %5 {offsets = [2, 1, 0], sizes = [8, 8, 12], strides = [1, 1, 1]} : vector<10x10x12xf32> to vector<8x8x12xf32>
    %23 = vector.shape_cast %22 : vector<8x8x12xf32> to vector<64x12xf32>
    %24 = vector.extract_strided_slice %5 {offsets = [2, 2, 0], sizes = [8, 8, 12], strides = [1, 1, 1]} : vector<10x10x12xf32> to vector<8x8x12xf32>
    %25 = vector.shape_cast %24 : vector<8x8x12xf32> to vector<64x12xf32>
    %26 = tpu.concatenate %9, %11, %13, %15, %17, %19, %21, %23, %25 in 1 : vector<64x12xf32>, vector<64x12xf32>, vector<64x12xf32>, vector<64x12xf32>, vector<64x12xf32>, vector<64x12xf32>, vector<64x12xf32>, vector<64x12xf32>, vector<64x12xf32> -> vector<64x108xf32>
    %cst_15 = arith.constant dense<0.000000e+00> : vector<64x16xf32>
    %27 = tpu.matmul %26, %6, %cst_15 {dimension_numbers = #tpu.dot_dimension_numbers<[1], [0], [0], [1], [0, 0, 1, 1], [], []>} : vector<64x108xf32>, vector<108x16xf32>, vector<64x16xf32> -> vector<64x16xf32>
    %28 = vector.broadcast %7 : vector<1x16xf32> to vector<64x16xf32>
    %29 = arith.addf %27, %28 : vector<64x16xf32>
    %30 = vector.shape_cast %29 : vector<64x16xf32> to vector<8x8x16xf32>
    %c0_16 = arith.constant 0 : index
    %c0_17 = arith.constant 0 : index
    %c0_18 = arith.constant 0 : index
    %c0_19 = arith.constant 0 : index
    %31 = vector.load %arg4[%c0_16, %c0_17, %c0_18, %c0_19] : memref<1x8x8x16xf32, #tpu.memory_space<vmem>>, vector<1x8x8x16xf32>
    %32 = vector.shape_cast %31 : vector<1x8x8x16xf32> to vector<8x8x16xf32>
    %33 = vector.shape_cast %30 : vector<8x8x16xf32> to vector<1x8x8x16xf32>
    tpu.vector_store %arg4[%c0_16, %c0_17, %c0_18, %c0_19], %33 {strides = array<i32>} : memref<1x8x8x16xf32, #tpu.memory_space<vmem>>, vector<1x8x8x16xf32>,
    return
  }
  func.func @transform_0(%arg0: i32) -> (i32, i32, i32, i32) {
    %c0_i32 = arith.constant 0 : i32
    %c0_i32_0 = arith.constant 0 : i32
    %c0_i32_1 = arith.constant 0 : i32
    %c0_i32_2 = arith.constant 0 : i32
    return %arg0, %c0_i32, %c0_i32_0, %c0_i32_1 : i32, i32, i32, i32
  }
  func.func @transform_1(%arg0: i32) -> (i32, i32) {
    %c0_i32 = arith.constant 0 : i32
    %c0_i32_0 = arith.constant 0 : i32
    %c0_i32_1 = arith.constant 0 : i32
    return %c0_i32, %c0_i32_0 : i32, i32
  }
  func.func @transform_2(%arg0: i32) -> (i32, i32) {
    %c0_i32 = arith.constant 0 : i32
    %c0_i32_0 = arith.constant 0 : i32
    %c0_i32_1 = arith.constant 0 : i32
    return %c0_i32, %c0_i32_0 : i32, i32
  }
  func.func @transform_3(%arg0: i32) -> (i32, i32, i32, i32) {
    %c0_i32 = arith.constant 0 : i32
    %c0_i32_0 = arith.constant 0 : i32
    %c0_i32_1 = arith.constant 0 : i32
    %c0_i32_2 = arith.constant 0 : i32
    return %arg0, %c0_i32, %c0_i32_0, %c0_i32_1 : i32, i32, i32, i32
  }
}

</mosaic_0001>

<llo_original>
// kernel: tpu_custom_call.1
$region0: #{tpu_custom_call.1}
  #allocation0 [shape = 'u32[]', space=smem, size = 0x4, offset = 0x4, fixed_abs, tag = 'smem constant byte address 0x4 - core index']
  #allocation1 [shape = 'u32[144,128]{1,0:T(1,128)}', space=vmem, size = 0x12000, scoped, tag = 'internal scratch']
  #allocation2 [shape = 'f32[10,10,12]{2,1,0:T(8,128)}', space=vmem, size = 0x14000, scoped, tag = 'scratch operand']
  %s0 = inlined_call_operand.vmem [shape: f32[2,8,8,12], index: 0, kind: input, shape index: {}]
  %s1 = inlined_call_operand.vmem [shape: f32[108,16], index: 1, kind: input, shape index: {}]
  %s2 = inlined_call_operand.vmem [shape: f32[1,16], index: 2, kind: input, shape index: {}]
  %s3 = inlined_call_operand.hbm [shape: f32[2,8,8,16], index: 3, kind: output, shape index: {}]
  %s4 = sld [smem:[#allocation0]]
  $region45: #{tpu_custom_call.1} parent=0
    _
  %s6 = ssub.s32 1, %s4
  %s7 = scalar_select 0, %s6, %s4
  $region1: #{tpu_custom_call.1} parent=0
    #allocation3 [shape = 'u8[65536]{0}', space=vmem, size = 0x10000, scoped, tag = 'output window, operand 0']
    #allocation4 [shape = 's32[2]{0}', space=sflag, size = 0x8, scoped, tag = 'scoped memory for tpu_custom_call.1']
    %8 = vsyncpa [#allocation4], 0
    %s9 = scalar_lea.sflag [#allocation4], 1
    %10 = vsyncpa %s9, 0
    loop: start=0, step=1, limit=4
    $region2: #{tpu_custom_call.1} parent=1 // loop_pre_header
      _
    $region3: #{tpu_custom_call.1} parent=1 // loop_header
      %s12 = sphi 0, %s16
      %p13 = scmp.ge.s32.totalorder %s12, 4
      %s22 = sphi 0, %s24
      %s25 = sphi 0, %s22
      %s26 = sphi 0, %s25
      %s42 = sphi 0, %s26
      %s46 = sphi 0, %s46
      %s48 = sphi 0, %s46
      %s49 = sphi 0, %s48
      %s63 = sphi 0, %s49
      %s67 = sphi 0, %s67
      %s69 = sphi 0, %s67
      %s70 = sphi 0, %s69
      %s84 = sphi 0, %s70
      %s90 = sphi 0, %s92
      %s93 = sphi 0, %s90
      %s94 = sphi 0, %s93
      %s110 = sphi 0, %s94
    $region4: #{tpu_custom_call.1} parent=1 // loop_header_branch
      %15 = sbr.rel (%p13) target = $region8
    $region5: #{tpu_custom_call.1} parent=1 // loop_body
      %s17 = ssub.s32 %s12, 1
      %s18 = ssub.s32 %s12, 2
      %s19 = sadd.s32 %s12, 1
      %s20 = ssub.s32 %s12, %s19
      %p21 = scmp.eq.s32.totalorder %s20, 0
      %s23 = sadd.s32 %s22, 1
      %s24 = scalar_select %p21, %s22, %s23
      %p27 = pneg %p21
      %p28 = scmp.eq.s32.totalorder %s12, 1
      %p29 = por %p27, %p28
      %p30 = scmp.ne.s32.totalorder %s22, %s25
      %p31 = scmp.eq.s32.totalorder %s12, 0
      %p32 = por %p30, %p31
      %p33 = scmp.ne.s32.totalorder %s22, %s25
      %p34 = scmp.eq.s32.totalorder %s17, 1
      %p35 = por %p33, %p34
      %p36 = scmp.ne.s32.totalorder %s25, %s26
      %p37 = scmp.eq.s32.totalorder %s17, 0
      %p38 = por %p36, %p37
      %p39 = scmp.ne.s32.totalorder %s25, %s26
      %p40 = scmp.eq.s32.totalorder %s18, 1
      %p41 = por %p39, %p40
      %p43 = scmp.ne.s32.totalorder %s26, %s42
      %p44 = scmp.eq.s32.totalorder %s18, 0
      %p45 = por %p43, %p44
      %s47 = sadd.s32 %s46, 1
      %p50 = scmp.eq.s32.totalorder %s12, 1
      %p51 = scmp.ne.s32.totalorder %s46, %s48
      %p52 = scmp.eq.s32.totalorder %s12, 0
      %p53 = por %p51, %p52
      %p54 = scmp.ne.s32.totalorder %s46, %s48
      %p55 = scmp.eq.s32.totalorder %s17, 1
      %p56 = por %p54, %p55
      %p57 = scmp.ne.s32.totalorder %s48, %s49
      %p58 = scmp.eq.s32.totalorder %s17, 0
      %p59 = por %p57, %p58
      %p60 = scmp.ne.s32.totalorder %s48, %s49
      %p61 = scmp.eq.s32.totalorder %s18, 1
      %p62 = por %p60, %p61
      %p64 = scmp.ne.s32.totalorder %s49, %s63
      %p65 = scmp.eq.s32.totalorder %s18, 0
      %p66 = por %p64, %p65
      %s68 = sadd.s32 %s67, 1
      %p71 = scmp.eq.s32.totalorder %s12, 1
      %p72 = scmp.ne.s32.totalorder %s67, %s69
      %p73 = scmp.eq.s32.totalorder %s12, 0
      %p74 = por %p72, %p73
      %p75 = scmp.ne.s32.totalorder %s67, %s69
      %p76 = scmp.eq.s32.totalorder %s17, 1
      %p77 = por %p75, %p76
      %p78 = scmp.ne.s32.totalorder %s69, %s70
      %p79 = scmp.eq.s32.totalorder %s17, 0
      %p80 = por %p78, %p79
      %p81 = scmp.ne.s32.totalorder %s69, %s70
      %p82 = scmp.eq.s32.totalorder %s18, 1
      %p83 = por %p81, %p82
      %p85 = scmp.ne.s32.totalorder %s70, %s84
      %p86 = scmp.eq.s32.totalorder %s18, 0
      %p87 = por %p85, %p86
      %s88 = ssub.s32 %s12, %s19
      %p89 = scmp.eq.s32.totalorder %s88, 0
      %s91 = sadd.s32 %s90, 1
      %s92 = scalar_select %p89, %s90, %s91
      %p95 = pneg %p89
      %p96 = scmp.eq.s32.totalorder %s12, 1
      %p97 = por %p95, %p96
      %p98 = scmp.ne.s32.totalorder %s90, %s93
      %p99 = scmp.eq.s32.totalorder %s12, 0
      %p100 = por %p98, %p99
      %p101 = scmp.ne.s32.totalorder %s90, %s93
      %p102 = scmp.eq.s32.totalorder %s17, 1
      %p103 = por %p101, %p102
      %p104 = scmp.ne.s32.totalorder %s93, %s94
      %p105 = scmp.eq.s32.totalorder %s17, 0
      %p106 = por %p104, %p105
      %p107 = scmp.ne.s32.totalorder %s93, %s94
      %p108 = scmp.eq.s32.totalorder %s18, 1
      %p109 = por %p107, %p108
      %p111 = scmp.ne.s32.totalorder %s94, %s110
      %p112 = scmp.eq.s32.totalorder %s18, 0
      %p113 = por %p111, %p112
      %p114 = scmp.le.s32.totalorder 1, %s12
      %p115 = scmp.lt.s32.totalorder %s12, 3
      %p116 = pnand %p114, %p115
      %p117 = pneg %p116
      // Predicated region
      $region9: #{tpu_custom_call.1} parent=5 // pred_check
        _
      $region10: #{tpu_custom_call.1} parent=5 // pred_check_branch
        %119 = sbr.rel (%p116) target = $region12
      $region11: #{tpu_custom_call.1} parent=5 // pred_region
        %s120 = ssub.s32 %s12, 1
        // Predicated region
        $region13: #{tpu_custom_call.1} parent=11 // pred_check
          %p121 = pneg %p59
        $region14: #{tpu_custom_call.1} parent=11 // pred_check_branch
          %123 = sbr.rel (%p121) target = $region16
        $region15: #{tpu_custom_call.1} parent=11 // pred_region
          _
        $region16: #{tpu_custom_call.1} parent=11 // pred_fallthru
          _
        // Predicated region
        $region17: #{tpu_custom_call.1} parent=11 // pred_check
          %p124 = pneg %p80
        $region18: #{tpu_custom_call.1} parent=11 // pred_check_branch
          %126 = sbr.rel (%p124) target = $region20
        $region19: #{tpu_custom_call.1} parent=11 // pred_region
          _
        $region20: #{tpu_custom_call.1} parent=11 // pred_fallthru
          _
      $region12: #{tpu_custom_call.1} parent=5 // pred_fallthru
        _
      %p127 = scmp.lt.s32.totalorder %s12, 2
      // Predicated region
      $region21: #{tpu_custom_call.1} parent=5 // pred_check
        %p128 = pneg %p127
      $region22: #{tpu_custom_call.1} parent=5 // pred_check_branch
        %130 = sbr.rel (%p128) target = $region24
      $region23: #{tpu_custom_call.1} parent=5 // pred_region
        // Predicated region
        $region25: #{tpu_custom_call.1} parent=23 // pred_check
          %p131 = pneg %p32
        $region26: #{tpu_custom_call.1} parent=23 // pred_check_branch
          %133 = sbr.rel (%p131) target = $region28
        $region27: #{tpu_custom_call.1} parent=23 // pred_region
          %p134 = scmp.lt.s32.totalorder %s12, 1
          %s135 = scalar_select %p134, %s12, 1
          %s136 = smul.addr %s135, 8
          %s137 = smul.addr %s136, 8
          %s138 = scalar_lea.vmem %s0, %s137
        $region28: #{tpu_custom_call.1} parent=23 // pred_fallthru
          _
      $region24: #{tpu_custom_call.1} parent=5 // pred_fallthru
        _
      %p139 = scmp.le.s32.totalorder 1, %s12
      %p140 = scmp.lt.s32.totalorder %s12, 3
      %p141 = pnand %p139, %p140
      %p142 = pneg %p141
      // Predicated region
      $region29: #{tpu_custom_call.1} parent=5 // pred_check
        _
      $region30: #{tpu_custom_call.1} parent=5 // pred_check_branch
        %144 = sbr.rel (%p141) target = $region32
      $region31: #{tpu_custom_call.1} parent=5 // pred_region
        %s145 = ssub.s32 %s12, 1
        %p146 = scmp.lt.s32.totalorder %s17, 1
        %s147 = scalar_select %p146, %s17, 1
        %s148 = smul.addr %s147, 8
        %s149 = smul.addr %s148, 8
        %s150 = scalar_lea.vmem %s0, %s149
        %p151 = pneg %p38
        %p152 = pneg %p35
        %p153 = pneg %p59
        %p154 = pneg %p56
        %p155 = pneg %p80
        %p156 = pneg %p77
        %p157 = pneg %p106
        %p158 = pneg %p103
        %s159 = sand.u32 %s93, 1
        %s160 = scalar_lea.sflag [#allocation4], %s159
        %s161 = sand.u32 %s93, 1
        %s162 = smul.addr %s161, 64
        %s163 = scalar_lea.vmem [#allocation3], %s162
        %p164 = scmp.lt.s32.totalorder %s17, 1
        %s165 = scalar_select %p164, %s17, 1
        %s166 = smul.addr %s165, 8
        %s167 = smul.addr %s166, 8
        %s168 = scalar_lea.vmem %s0, %s167
        %vm169 = vcmask 97280
        %170 = vst.msk [vmem:[#allocation2] sm:$0xff] %vm169, 0.0
        %vm171 = vcmask 91136
        %172 = vst.msk [vmem:[#allocation2 + $0x8] sm:$0x3] %vm171, 0.0
        %173 = vst.msk [vmem:[#allocation2 + $0x10] sm:$0xff] %vm169, 0.0
        %174 = vst.msk [vmem:[#allocation2 + $0x18] sm:$0x3] %vm171, 0.0
        %175 = vst.msk [vmem:[#allocation2 + $0x20] sm:$0xff] %vm169, 0.0
        %176 = vst.msk [vmem:[#allocation2 + $0x28] sm:$0x3] %vm171, 0.0
        %177 = vst.msk [vmem:[#allocation2 + $0x30] sm:$0xff] %vm169, 0.0
        %178 = vst.msk [vmem:[#allocation2 + $0x38] sm:$0x3] %vm171, 0.0
        %179 = vst.msk [vmem:[#allocation2 + $0x40] sm:$0xff] %vm169, 0.0
        %180 = vst.msk [vmem:[#allocation2 + $0x48] sm:$0x3] %vm171, 0.0
        %181 = vst.msk [vmem:[#allocation2 + $0x50] sm:$0xff] %vm169, 0.0
        %182 = vst.msk [vmem:[#allocation2 + $0x58] sm:$0x3] %vm171, 0.0
        %183 = vst.msk [vmem:[#allocation2 + $0x60] sm:$0xff] %vm169, 0.0
        %184 = vst.msk [vmem:[#allocation2 + $0x68] sm:$0x3] %vm171, 0.0
        %185 = vst.msk [vmem:[#allocation2 + $0x70] sm:$0xff] %vm169, 0.0
        %186 = vst.msk [vmem:[#allocation2 + $0x78] sm:$0x3] %vm171, 0.0
        %187 = vst.msk [vmem:[#allocation2 + $0x80] sm:$0xff] %vm169, 0.0
        %188 = vst.msk [vmem:[#allocation2 + $0x88] sm:$0x3] %vm171, 0.0
        %189 = vst.msk [vmem:[#allocation2 + $0x90] sm:$0xff] %vm169, 0.0
        %190 = vst.msk [vmem:[#allocation2 + $0x98] sm:$0x3] %vm171, 0.0
        %v191 = vld [vmem:[%s168] sm:$0xff]
        %v192 = vld [vmem:[%s168 + $0x8] sm:$0xff]
        %v193 = vld [vmem:[%s168 + $0x10] sm:$0xff]
        %v194 = vld [vmem:[%s168 + $0x18] sm:$0xff]
        %v195 = vld [vmem:[%s168 + $0x20] sm:$0xff]
        %v196 = vld [vmem:[%s168 + $0x28] sm:$0xff]
        %v197 = vld [vmem:[%s168 + $0x30] sm:$0xff]
        %v198 = vld [vmem:[%s168 + $0x38] sm:$0xff]
        %s199 = scalar_lea.vmem [#allocation2], 16
        %200 = vst.msk [vmem:[%s199 + $0x1] sm:$0xff] %vm169, %v191
        %201 = vst.msk [vmem:[%s199 + $0x11] sm:$0xff] %vm169, %v192
        %202 = vst.msk [vmem:[%s199 + $0x21] sm:$0xff] %vm169, %v193
        %203 = vst.msk [vmem:[%s199 + $0x31] sm:$0xff] %vm169, %v194
        %204 = vst.msk [vmem:[%s199 + $0x41] sm:$0xff] %vm169, %v195
        %205 = vst.msk [vmem:[%s199 + $0x51] sm:$0xff] %vm169, %v196
        %206 = vst.msk [vmem:[%s199 + $0x61] sm:$0xff] %vm169, %v197
        %207 = vst.msk [vmem:[%s199 + $0x71] sm:$0xff] %vm169, %v198
        %v208 = vld [vmem:[#allocation2] sm:$0xff]
        %v209 = vld [vmem:[#allocation2 + $0x8] sm:$0x3]
        %v210 = vld [vmem:[#allocation2 + $0x10] sm:$0xff]
        %v211 = vld [vmem:[#allocation2 + $0x18] sm:$0x3]
        %v212 = vld [vmem:[#allocation2 + $0x20] sm:$0xff]
        %v213 = vld [vmem:[#allocation2 + $0x28] sm:$0x3]
        %v214 = vld [vmem:[#allocation2 + $0x30] sm:$0xff]
        %v215 = vld [vmem:[#allocation2 + $0x38] sm:$0x3]
        %v216 = vld [vmem:[#allocation2 + $0x40] sm:$0xff]
        %v217 = vld [vmem:[#allocation2 + $0x48] sm:$0x3]
        %v218 = vld [vmem:[#allocation2 + $0x50] sm:$0xff]
        %v219 = vld [vmem:[#allocation2 + $0x58] sm:$0x3]
        %v220 = vld [vmem:[#allocation2 + $0x60] sm:$0xff]
        %v221 = vld [vmem:[#allocation2 + $0x68] sm:$0x3]
        %v222 = vld [vmem:[#allocation2 + $0x70] sm:$0xff]
        %v223 = vld [vmem:[#allocation2 + $0x78] sm:$0x3]
        %v224 = vld [vmem:[#allocation2 + $0x80] sm:$0xff]
        %v225 = vld [vmem:[#allocation2 + $0x88] sm:$0x3]
        %v226 = vld [vmem:[#allocation2 + $0x90] sm:$0xff]
        %v227 = vld [vmem:[#allocation2 + $0x98] sm:$0x3]
        %v228 = vld [vmem:[%s1] sm:$0xff]
        %v229 = vld [vmem:[%s1 + $0x8] sm:$0xff]
        %v230 = vld [vmem:[%s1 + $0x10] sm:$0xff]
        %v231 = vld [vmem:[%s1 + $0x18] sm:$0xff]
        %v232 = vld [vmem:[%s1 + $0x20] sm:$0xff]
        %v233 = vld [vmem:[%s1 + $0x28] sm:$0xff]
        %v234 = vld [vmem:[%s1 + $0x30] sm:$0xff]
        %v235 = vld [vmem:[%s1 + $0x38] sm:$0xff]
        %v236 = vld [vmem:[%s1 + $0x40] sm:$0xff]
        %v237 = vld [vmem:[%s1 + $0x48] sm:$0xff]
        %v238 = vld [vmem:[%s1 + $0x50] sm:$0xff]
        %v239 = vld [vmem:[%s1 + $0x58] sm:$0xff]
        %v240 = vld [vmem:[%s1 + $0x60] sm:$0xff]
        %v241 = vld [vmem:[%s1 + $0x68] sm:$0xf]
        %v242 = vld [vmem:[%s2] sm:$0x1]
        %vm259 = vcmask 1046528
        %v260 = vrot.slane %v208, 1
        %v261 = vrot.slane %v209, 1
        %v262 = vsel %vm259, %v260, %v261
        %v263 = vrot.slane %v210, 1
        %v264 = vrot.slane %v211, 1
        %v265 = vsel %vm259, %v263, %v264
        %v266 = vrot.slane %v212, 1
        %v267 = vrot.slane %v213, 1
        %v268 = vsel %vm259, %v266, %v267
        %v269 = vrot.slane %v214, 1
        %v270 = vrot.slane %v215, 1
        %v271 = vsel %vm259, %v269, %v270
        %v272 = vrot.slane %v216, 1
        %v273 = vrot.slane %v217, 1
        %v274 = vsel %vm259, %v272, %v273
        %v275 = vrot.slane %v218, 1
        %v276 = vrot.slane %v219, 1
        %v277 = vsel %vm259, %v275, %v276
        %v278 = vrot.slane %v220, 1
        %v279 = vrot.slane %v221, 1
        %v280 = vsel %vm259, %v278, %v279
        %v281 = vrot.slane %v222, 1
        %v282 = vrot.slane %v223, 1
        %v283 = vsel %vm259, %v281, %v282
        %vm284 = vcmask 1045504
        %v285 = vrot.slane %v208, 2
        %v286 = vrot.slane %v209, 2
        %v287 = vsel %vm284, %v285, %v286
        %v288 = vrot.slane %v210, 2
        %v289 = vrot.slane %v211, 2
        %v290 = vsel %vm284, %v288, %v289
        %v291 = vrot.slane %v212, 2
        %v292 = vrot.slane %v213, 2
        %v293 = vsel %vm284, %v291, %v292
        %v294 = vrot.slane %v214, 2
        %v295 = vrot.slane %v215, 2
        %v296 = vsel %vm284, %v294, %v295
        %v297 = vrot.slane %v216, 2
        %v298 = vrot.slane %v217, 2
        %v299 = vsel %vm284, %v297, %v298
        %v300 = vrot.slane %v218, 2
        %v301 = vrot.slane %v219, 2
        %v302 = vsel %vm284, %v300, %v301
        %v303 = vrot.slane %v220, 2
        %v304 = vrot.slane %v221, 2
        %v305 = vsel %vm284, %v303, %v304
        %v306 = vrot.slane %v222, 2
        %v307 = vrot.slane %v223, 2
        %v308 = vsel %vm284, %v306, %v307
        %v311 = vrot.slane %v224, 1
        %v312 = vrot.slane %v225, 1
        %v313 = vsel %vm259, %v311, %v312
        %v314 = vrot.slane %v224, 2
        %v315 = vrot.slane %v225, 2
        %v316 = vsel %vm284, %v314, %v315
        %v319 = vrot.slane %v226, 1
        %v320 = vrot.slane %v227, 1
        %v321 = vsel %vm259, %v319, %v320
        %v322 = vrot.slane %v226, 2
        %v323 = vrot.slane %v227, 2
        %v324 = vsel %vm284, %v322, %v323
        %325 = vrot.lane.b32.xlu0 %v262, 12
        %v326 = vpop.permute.xlu0 %325
        %327 = vrot.lane.b32.xlu0 %v265, 12
        %v328 = vpop.permute.xlu0 %327
        %329 = vrot.lane.b32.xlu0 %v268, 12
        %v330 = vpop.permute.xlu0 %329
        %331 = vrot.lane.b32.xlu0 %v271, 12
        %v332 = vpop.permute.xlu0 %331
        %333 = vrot.lane.b32.xlu0 %v274, 12
        %v334 = vpop.permute.xlu0 %333
        %335 = vrot.lane.b32.xlu0 %v277, 12
        %v336 = vpop.permute.xlu0 %335
        %337 = vrot.lane.b32.xlu0 %v280, 12
        %v338 = vpop.permute.xlu0 %337
        %339 = vrot.lane.b32.xlu0 %v283, 12
        %v340 = vpop.permute.xlu0 %339
        %349 = vrot.lane.b32.xlu0 %v287, 24
        %v350 = vpop.permute.xlu0 %349
        %351 = vrot.lane.b32.xlu0 %v290, 24
        %v352 = vpop.permute.xlu0 %351
        %353 = vrot.lane.b32.xlu0 %v293, 24
        %v354 = vpop.permute.xlu0 %353
        %355 = vrot.lane.b32.xlu0 %v296, 24
        %v356 = vpop.permute.xlu0 %355
        %357 = vrot.lane.b32.xlu0 %v299, 24
        %v358 = vpop.permute.xlu0 %357
        %359 = vrot.lane.b32.xlu0 %v302, 24
        %v360 = vpop.permute.xlu0 %359
        %361 = vrot.lane.b32.xlu0 %v305, 24
        %v362 = vpop.permute.xlu0 %361
        %363 = vrot.lane.b32.xlu0 %v308, 24
        %v364 = vpop.permute.xlu0 %363
        %373 = vrot.lane.b32.xlu0 %v210, 36
        %v374 = vpop.permute.xlu0 %373
        %375 = vrot.lane.b32.xlu0 %v212, 36
        %v376 = vpop.permute.xlu0 %375
        %377 = vrot.lane.b32.xlu0 %v214, 36
        %v378 = vpop.permute.xlu0 %377
        %379 = vrot.lane.b32.xlu0 %v216, 36
        %v380 = vpop.permute.xlu0 %379
        %381 = vrot.lane.b32.xlu0 %v218, 36
        %v382 = vpop.permute.xlu0 %381
        %383 = vrot.lane.b32.xlu0 %v220, 36
        %v384 = vpop.permute.xlu0 %383
        %385 = vrot.lane.b32.xlu0 %v222, 36
        %v386 = vpop.permute.xlu0 %385
        %387 = vrot.lane.b32.xlu0 %v224, 36
        %v388 = vpop.permute.xlu0 %387
        %397 = vrot.lane.b32.xlu0 %v265, 48
        %v398 = vpop.permute.xlu0 %397
        %399 = vrot.lane.b32.xlu0 %v268, 48
        %v400 = vpop.permute.xlu0 %399
        %401 = vrot.lane.b32.xlu0 %v271, 48
        %v402 = vpop.permute.xlu0 %401
        %403 = vrot.lane.b32.xlu0 %v274, 48
        %v404 = vpop.permute.xlu0 %403
        %405 = vrot.lane.b32.xlu0 %v277, 48
        %v406 = vpop.permute.xlu0 %405
        %407 = vrot.lane.b32.xlu0 %v280, 48
        %v408 = vpop.permute.xlu0 %407
        %409 = vrot.lane.b32.xlu0 %v283, 48
        %v410 = vpop.permute.xlu0 %409
        %411 = vrot.lane.b32.xlu0 %v313, 48
        %v412 = vpop.permute.xlu0 %411
        %421 = vrot.lane.b32.xlu0 %v290, 60
        %v422 = vpop.permute.xlu0 %421
        %423 = vrot.lane.b32.xlu0 %v293, 60
        %v424 = vpop.permute.xlu0 %423
        %425 = vrot.lane.b32.xlu0 %v296, 60
        %v426 = vpop.permute.xlu0 %425
        %427 = vrot.lane.b32.xlu0 %v299, 60
        %v428 = vpop.permute.xlu0 %427
        %429 = vrot.lane.b32.xlu0 %v302, 60
        %v430 = vpop.permute.xlu0 %429
        %431 = vrot.lane.b32.xlu0 %v305, 60
        %v432 = vpop.permute.xlu0 %431
        %433 = vrot.lane.b32.xlu0 %v308, 60
        %v434 = vpop.permute.xlu0 %433
        %435 = vrot.lane.b32.xlu0 %v316, 60
        %v436 = vpop.permute.xlu0 %435
        %445 = vrot.lane.b32.xlu0 %v212, 72
        %v446 = vpop.permute.xlu0 %445
        %447 = vrot.lane.b32.xlu0 %v214, 72
        %v448 = vpop.permute.xlu0 %447
        %449 = vrot.lane.b32.xlu0 %v216, 72
        %v450 = vpop.permute.xlu0 %449
        %451 = vrot.lane.b32.xlu0 %v218, 72
        %v452 = vpop.permute.xlu0 %451
        %453 = vrot.lane.b32.xlu0 %v220, 72
        %v454 = vpop.permute.xlu0 %453
        %455 = vrot.lane.b32.xlu0 %v222, 72
        %v456 = vpop.permute.xlu0 %455
        %457 = vrot.lane.b32.xlu0 %v224, 72
        %v458 = vpop.permute.xlu0 %457
        %459 = vrot.lane.b32.xlu0 %v226, 72
        %v460 = vpop.permute.xlu0 %459
        %469 = vrot.lane.b32.xlu0 %v268, 84
        %v470 = vpop.permute.xlu0 %469
        %471 = vrot.lane.b32.xlu0 %v271, 84
        %v472 = vpop.permute.xlu0 %471
        %473 = vrot.lane.b32.xlu0 %v274, 84
        %v474 = vpop.permute.xlu0 %473
        %475 = vrot.lane.b32.xlu0 %v277, 84
        %v476 = vpop.permute.xlu0 %475
        %477 = vrot.lane.b32.xlu0 %v280, 84
        %v478 = vpop.permute.xlu0 %477
        %479 = vrot.lane.b32.xlu0 %v283, 84
        %v480 = vpop.permute.xlu0 %479
        %481 = vrot.lane.b32.xlu0 %v313, 84
        %v482 = vpop.permute.xlu0 %481
        %483 = vrot.lane.b32.xlu0 %v321, 84
        %v484 = vpop.permute.xlu0 %483
        %493 = vrot.lane.b32.xlu0 %v293, 96
        %v494 = vpop.permute.xlu0 %493
        %495 = vrot.lane.b32.xlu0 %v296, 96
        %v496 = vpop.permute.xlu0 %495
        %497 = vrot.lane.b32.xlu0 %v299, 96
        %v498 = vpop.permute.xlu0 %497
        %499 = vrot.lane.b32.xlu0 %v302, 96
        %v500 = vpop.permute.xlu0 %499
        %501 = vrot.lane.b32.xlu0 %v305, 96
        %v502 = vpop.permute.xlu0 %501
        %503 = vrot.lane.b32.xlu0 %v308, 96
        %v504 = vpop.permute.xlu0 %503
        %505 = vrot.lane.b32.xlu0 %v316, 96
        %v506 = vpop.permute.xlu0 %505
        %507 = vrot.lane.b32.xlu0 %v324, 96
        %v508 = vpop.permute.xlu0 %507
        %v517 = vsel %vm169, %v208, %v326
        %v518 = vsel %vm169, %v210, %v328
        %v519 = vsel %vm169, %v212, %v330
        %v520 = vsel %vm169, %v214, %v332
        %v521 = vsel %vm169, %v216, %v334
        %v522 = vsel %vm169, %v218, %v336
        %v523 = vsel %vm169, %v220, %v338
        %v524 = vsel %vm169, %v222, %v340
        %vm525 = vcmask 195584
        %v526 = vsel %vm525, %v517, %v350
        %v527 = vsel %vm525, %v518, %v352
        %v528 = vsel %vm525, %v519, %v354
        %v529 = vsel %vm525, %v520, %v356
        %v530 = vsel %vm525, %v521, %v358
        %v531 = vsel %vm525, %v522, %v360
        %v532 = vsel %vm525, %v523, %v362
        %v533 = vsel %vm525, %v524, %v364
        %vm534 = vcmask 293888
        %v535 = vsel %vm534, %v526, %v374
        %v536 = vsel %vm534, %v527, %v376
        %v537 = vsel %vm534, %v528, %v378
        %v538 = vsel %vm534, %v529, %v380
        %v539 = vsel %vm534, %v530, %v382
        %v540 = vsel %vm534, %v531, %v384
        %v541 = vsel %vm534, %v532, %v386
        %v542 = vsel %vm534, %v533, %v388
        %vm543 = vcmask 392192
        %v544 = vsel %vm543, %v535, %v398
        %v545 = vsel %vm543, %v536, %v400
        %v546 = vsel %vm543, %v537, %v402
        %v547 = vsel %vm543, %v538, %v404
        %v548 = vsel %vm543, %v539, %v406
        %v549 = vsel %vm543, %v540, %v408
        %v550 = vsel %vm543, %v541, %v410
        %v551 = vsel %vm543, %v542, %v412
        %vm552 = vcmask 490496
        %v553 = vsel %vm552, %v544, %v422
        %v554 = vsel %vm552, %v545, %v424
        %v555 = vsel %vm552, %v546, %v426
        %v556 = vsel %vm552, %v547, %v428
        %v557 = vsel %vm552, %v548, %v430
        %v558 = vsel %vm552, %v549, %v432
        %v559 = vsel %vm552, %v550, %v434
        %v560 = vsel %vm552, %v551, %v436
        %vm561 = vcmask 588800
        %v562 = vsel %vm561, %v553, %v446
        %v563 = vsel %vm561, %v554, %v448
        %v564 = vsel %vm561, %v555, %v450
        %v565 = vsel %vm561, %v556, %v452
        %v566 = vsel %vm561, %v557, %v454
        %v567 = vsel %vm561, %v558, %v456
        %v568 = vsel %vm561, %v559, %v458
        %v569 = vsel %vm561, %v560, %v460
        %vm570 = vcmask 687104
        %v571 = vsel %vm570, %v562, %v470
        %v572 = vsel %vm570, %v563, %v472
        %v573 = vsel %vm570, %v564, %v474
        %v574 = vsel %vm570, %v565, %v476
        %v575 = vsel %vm570, %v566, %v478
        %v576 = vsel %vm570, %v567, %v480
        %v577 = vsel %vm570, %v568, %v482
        %v578 = vsel %vm570, %v569, %v484
        %vm579 = vcmask 785408
        %v580 = vsel %vm579, %v571, %v494
        %v581 = vsel %vm579, %v572, %v496
        %v582 = vsel %vm579, %v573, %v498
        %v583 = vsel %vm579, %v574, %v500
        %v584 = vsel %vm579, %v575, %v502
        %v585 = vsel %vm579, %v576, %v504
        %v586 = vsel %vm579, %v577, %v506
        %v587 = vsel %vm579, %v578, %v508
        %v589 = vlaneseq
        %v590 = vshrl.u32 %v589, 7
        %v591 = vsub.s32 0, %v590
        %v592 = vrot.slane %v242, %v591
        %vm594 = vcmask 883712
        %v596 = vsel %vm594, %v580, 0
        %v599 = vsel %vm594, %v581, 0
        %v602 = vsel %vm594, %v582, 0
        %v605 = vsel %vm594, %v583, 0
        %v608 = vsel %vm594, %v584, 0
        %v611 = vsel %vm594, %v585, 0
        %v614 = vsel %vm594, %v586, 0
        %v617 = vsel %vm594, %v587, 0
        %vm619 = vcmask 1043456
        %v621 = vsel %vm619, %v241, 0
        %623 = vmatprep.subr.mxu0 0.0
        %624 = vmatpush1.msra.mxu0 %v228
        %625 = vmatprep.subr.mxu0 0.0
        %626 = vmatpush1.msra.mxu0 %v229
        %627 = vmatprep.subr.mxu0 0.0
        %628 = vmatpush1.msra.mxu0 %v230
        %629 = vmatprep.subr.mxu0 0.0
        %630 = vmatpush1.msra.mxu0 %v231
        %631 = vmatprep.subr.mxu0 0.0
        %632 = vmatpush1.msra.mxu0 %v232
        %633 = vmatprep.subr.mxu0 0.0
        %634 = vmatpush1.msra.mxu0 %v233
        %635 = vmatprep.subr.mxu0 0.0
        %636 = vmatpush1.msra.mxu0 %v234
        %637 = vmatprep.subr.mxu0 0.0
        %638 = vmatpush1.msra.mxu0 %v235
        %639 = vmatprep.subr.mxu0 0.0
        %640 = vmatpush1.msra.mxu0 %v236
        %641 = vmatprep.subr.mxu0 0.0
        %642 = vmatpush1.msra.mxu0 %v237
        %643 = vmatprep.subr.mxu0 0.0
        %644 = vmatpush1.msra.mxu0 %v238
        %645 = vmatprep.subr.mxu0 0.0
        %646 = vmatpush1.msra.mxu0 %v239
        %647 = vmatprep.subr.mxu0 0.0
        %648 = vmatpush1.msra.mxu0 %v240
        %649 = vmatprep.subr.mxu0 0.0
        %650 = vmatpush1.msra.mxu0 %v621
        %651 = vmatprep.subr.mxu0 0.0
        %652 = vmatpush1.msra.mxu0 0.0
        %653 = vmatprep.subr.mxu0 0.0
        %654 = vmatpush1.msra.mxu0 0.0
        %655 = vmatprep.subr.mxu0 0.0
        %656 = vmatpush1.msra.mxu0 0.0
        %657 = vmatprep.subr.mxu0 0.0
        %658 = vmatpush1.msra.mxu0 0.0
        %659 = vmatprep.subr.mxu0 0.0
        %660 = vmatpush1.msra.mxu0 0.0
        %661 = vmatprep.subr.mxu0 0.0
        %662 = vmatpush1.msra.mxu0 0.0
        %663 = vmatprep.subr.mxu0 0.0
        %664 = vmatpush1.msra.mxu0 0.0
        %665 = vmatprep.subr.mxu0 0.0
        %666 = vmatpush1.msra.mxu0 0.0
        %667 = vmatprep.subr.mxu0 0.0
        %668 = vmatpush1.msra.mxu0 0.0
        %669 = vmatprep.subr.mxu0 0.0
        %670 = vmatpush1.msra.mxu0 0.0
        %671 = vmatprep.subr.mxu0 0.0
        %672 = vmatpush1.msra.mxu0 0.0
        %673 = vmatprep.subr.mxu0 0.0
        %674 = vmatpush1.msra.mxu0 0.0
        %675 = vmatprep.subr.mxu0 0.0
        %676 = vmatpush1.msra.mxu0 0.0
        %677 = vmatprep.subr.mxu0 0.0
        %678 = vmatpush1.msra.mxu0 0.0
        %679 = vmatprep.subr.mxu0 0.0
        %680 = vmatpush1.msra.mxu0 0.0
        %681 = vmatprep.subr.mxu0 0.0
        %682 = vmatpush1.msra.mxu0 0.0
        %683 = vmatprep.subr.mxu0 0.0
        %684 = vmatpush1.msra.mxu0 0.0
        %685 = vmatprep.subr.mxu0 0.0
        %686 = vmatpush1.msra.mxu0 0.0
        %687 = vmatprep.mubr.f32.mxu0 0.0
        %688 = vmatmul.mubr.f32.gmra.mrb[0].mxu0 %v596
        %v689 = vpop.f32.mrb[0].mxu0
        %v690 = vadd.f32 %v592, %v689
        %v691 = vpop.f32.mrb[0].mxu0
        %692 = vmatprep.mubr.f32.mxu0 0.0
        %693 = vmatmul.mubr.f32.gmra.mrb[0].mxu0 %v599
        %v694 = vpop.f32.mrb[0].mxu0
        %v695 = vadd.f32 %v592, %v694
        %v696 = vpop.f32.mrb[0].mxu0
        %697 = vmatprep.mubr.f32.mxu0 0.0
        %698 = vmatmul.mubr.f32.gmra.mrb[0].mxu0 %v602
        %v699 = vpop.f32.mrb[0].mxu0
        %v700 = vadd.f32 %v592, %v699
        %v701 = vpop.f32.mrb[0].mxu0
        %702 = vmatprep.mubr.f32.mxu0 0.0
        %703 = vmatmul.mubr.f32.gmra.mrb[0].mxu0 %v605
        %v704 = vpop.f32.mrb[0].mxu0
        %v705 = vadd.f32 %v592, %v704
        %v706 = vpop.f32.mrb[0].mxu0
        %707 = vmatprep.mubr.f32.mxu0 0.0
        %708 = vmatmul.mubr.f32.gmra.mrb[0].mxu0 %v608
        %v709 = vpop.f32.mrb[0].mxu0
        %v710 = vadd.f32 %v592, %v709
        %v711 = vpop.f32.mrb[0].mxu0
        %712 = vmatprep.mubr.f32.mxu0 0.0
        %713 = vmatmul.mubr.f32.gmra.mrb[0].mxu0 %v611
        %v714 = vpop.f32.mrb[0].mxu0
        %v715 = vadd.f32 %v592, %v714
        %v716 = vpop.f32.mrb[0].mxu0
        %717 = vmatprep.mubr.f32.mxu0 0.0
        %718 = vmatmul.mubr.f32.gmra.mrb[0].mxu0 %v614
        %v719 = vpop.f32.mrb[0].mxu0
        %v720 = vadd.f32 %v592, %v719
        %v721 = vpop.f32.mrb[0].mxu0
        %722 = vmatprep.mubr.f32.mxu0 0.0
        %723 = vmatmul.mubr.f32.gmra.mrb[0].mxu0 %v617
        %v724 = vpop.f32.mrb[0].mxu0
        %v725 = vadd.f32 %v592, %v724
        %v726 = vpop.f32.mrb[0].mxu0
        %727 = vdwg.mxu0
        %vm728 = vcmask 130048
        %729 = vst.msk [vmem:[%s163] sm:$0xff] %vm728, %v690
        %730 = vst.msk [vmem:[%s163 + $0x8] sm:$0xff] %vm728, %v695
        %731 = vst.msk [vmem:[%s163 + $0x10] sm:$0xff] %vm728, %v700
        %732 = vst.msk [vmem:[%s163 + $0x18] sm:$0xff] %vm728, %v705
        %733 = vst.msk [vmem:[%s163 + $0x20] sm:$0xff] %vm728, %v710
        %734 = vst.msk [vmem:[%s163 + $0x28] sm:$0xff] %vm728, %v715
        %735 = vst.msk [vmem:[%s163 + $0x30] sm:$0xff] %vm728, %v720
        %736 = vst.msk [vmem:[%s163 + $0x38] sm:$0xff] %vm728, %v725
        %s737 = sand.u32 %s93, 1
        %s738 = scalar_lea.sflag [#allocation4], %s737
        %s739 = sand.u32 %s93, 1
        %s740 = smul.addr %s739, 64
        %s741 = scalar_lea.vmem [#allocation3], %s740
        // Predicated region
        $region33: #{tpu_custom_call.1} parent=31 // pred_check
          %p742 = pneg %p103
        $region34: #{tpu_custom_call.1} parent=31 // pred_check_branch
          %744 = sbr.rel (%p742) target = $region36
        $region35: #{tpu_custom_call.1} parent=31 // pred_region
          %s746 = ssub.s32 1024, 1024
          %747 = vsyncadd %s738, %s746
          %s748 = smul.addr %s17, 8
          %s749 = smul.addr %s748, 128
          %s750 = scalar_lea.hbm %s3, %s749
          %s751 = sshll.u32 %s741, 4
          %s752 = int_to_ptr.vmem [resolvable:$true] %s751
          %757 = dma.vmem_to_hbm [thread:$0]  %s752, 1024, %s750, %s738, 128, 128, 8
        $region36: #{tpu_custom_call.1} parent=31 // pred_fallthru
          _
      $region32: #{tpu_custom_call.1} parent=5 // pred_fallthru
        _
      %p758 = scmp.le.s32.totalorder 2, %s12
      // Predicated region
      $region37: #{tpu_custom_call.1} parent=5 // pred_check
        %p759 = pneg %p758
      $region38: #{tpu_custom_call.1} parent=5 // pred_check_branch
        %761 = sbr.rel (%p759) target = $region40
      $region39: #{tpu_custom_call.1} parent=5 // pred_region
        %s762 = ssub.s32 %s12, 2
        // Predicated region
        $region41: #{tpu_custom_call.1} parent=39 // pred_check
          %p763 = pneg %p109
        $region42: #{tpu_custom_call.1} parent=39 // pred_check_branch
          %765 = sbr.rel (%p763) target = $region44
        $region43: #{tpu_custom_call.1} parent=39 // pred_region
          %s766 = sand.u32 %s94, 1
          %s767 = scalar_lea.sflag [#allocation4], %s766
          %s768 = sand.u32 %s94, 1
          %s769 = smul.addr %s768, 64
          %s770 = scalar_lea.vmem [#allocation3], %s769
          %771 = dma.done %s767, 1024
        $region44: #{tpu_custom_call.1} parent=39 // pred_fallthru
          _
      $region40: #{tpu_custom_call.1} parent=5 // pred_fallthru
        _
    $region6: #{tpu_custom_call.1} parent=1 // loop_footer
      %s16 = sadd.s32 1, %s12
    $region7: #{tpu_custom_call.1} parent=1 // loop_footer_branch
      %11 = sbr.rel target = $region3
    $region8: #{tpu_custom_call.1} parent=1 // loop_exit
      _
    %772 = vsyncpa [#allocation4], 1
    %s773 = scalar_lea.sflag [#allocation4], 1
    %774 = vsyncpa %s773, 1

</llo_original>
